<compile_context>
chip_gen: v7x
topology: tpu7x:2x2x1
jax: 0.10.0
libtpu: 0.0.40
codegen_flags: <defaults>
</compile_context>

<pallas_src>
import jax
import jax.numpy as jnp
from jax import lax
from jax.experimental import pallas as pl
from jax.experimental.pallas import tpu as pltpu

_BN_EPS = 1e-5


def _round_up(x, m):
    return (x + m - 1) // m * m


def _cdiv(a, b):
    return -(-a // b)


# ----------------------------------------------------------------------------
# Tiling plans
# ----------------------------------------------------------------------------
def _m_plan(M, max_tm=512):
    """M tiling: TM multiple of 16 (bf16 sublane packing), <= max_tm.
    Prefer >= 2 M tiles for larger M so both v7x TensorCores get work."""
    mt = max(1, _cdiv(M, max_tm))
    if mt == 1 and M > 256:
        mt = 2
    tm = _round_up(_cdiv(M, mt), 16)
    return tm * mt, tm                      # (Mp, TM)


def _n_plan(OC):
    """Output-channel tile: full OC up to 256, else 256 (fills v6e/v7x MXU lanes)."""
    return OC if OC <= 256 else 256


def _k_plan(K, max_tk=2304):
    """K padded to a 128 multiple; single K step whenever it fits (<= 2304)."""
    Kp = _round_up(K, 128)
    if Kp <= max_tk:
        return Kp, Kp
    for cand in range(max_tk, 127, -128):
        if Kp % cand == 0:
            return Kp, cand
    return Kp, 128


# ----------------------------------------------------------------------------
# Tiled matmul kernel (bf16 operands, f32 VMEM accumulator -> bf16 Y)
# + per-M-tile BN partial statistics.  Used for the strided convs (im2col path).
# ----------------------------------------------------------------------------
def _matmul_stats_kernel(a_ref, b_ref, y_ref, sum_ref, sq_ref, acc_ref):
    k = pl.program_id(2)

    @pl.when(k == 0)
    def _():
        acc_ref[...] = jnp.zeros_like(acc_ref)

    acc_ref[...] += jnp.dot(a_ref[...], b_ref[...],
                            preferred_element_type=jnp.float32)

    @pl.when(k == pl.num_programs(2) - 1)
    def _():
        acc = acc_ref[...]
        # Padded A rows are zero -> contribute nothing; true M divides later.
        sum_ref[...] = jnp.sum(acc, axis=0, keepdims=True)[None]
        sq_ref[...] = jnp.sum(acc * acc, axis=0, keepdims=True)[None]
        y_ref[...] = acc.astype(y_ref.dtype)


def _matmul_with_stats(A, B, TM, TN, TK):
    """A:[Mp,Kp] bf16, B:[Kp,OC] bf16 -> (Y bf16 [Mp,OC], per-tile sum, sumsq)."""
    Mp, Kp = A.shape
    Kb, OC = B.shape
    assert Kp == Kb and Mp % TM == 0 and OC % TN == 0 and Kp % TK == 0
    Mt, Nt, Kt = Mp // TM, OC // TN, Kp // TK
    return pl.pallas_call(
        _matmul_stats_kernel,
        out_shape=(
            jax.ShapeDtypeStruct((Mp, OC), jnp.bfloat16),
            jax.ShapeDtypeStruct((Mt, 1, OC), jnp.float32),
            jax.ShapeDtypeStruct((Mt, 1, OC), jnp.float32),
        ),
        grid_spec=pltpu.PrefetchScalarGridSpec(
            num_scalar_prefetch=0,
            grid=(Mt, Nt, Kt),
            in_specs=[
                pl.BlockSpec((TM, TK), lambda i, j, k: (i, k)),
                pl.BlockSpec((TK, TN), lambda i, j, k: (k, j)),
            ],
            out_specs=[
                pl.BlockSpec((TM, TN), lambda i, j, k: (i, j)),
                pl.BlockSpec((1, 1, TN), lambda i, j, k: (i, 0, j)),
                pl.BlockSpec((1, 1, TN), lambda i, j, k: (i, 0, j)),
            ],
            scratch_shapes=[pltpu.VMEM((TM, TN), jnp.float32)],
        ),
        compiler_params=pltpu.CompilerParams(
            dimension_semantics=("parallel", "parallel", "arbitrary")),
    )(A, B)


# ----------------------------------------------------------------------------
# Fused 3x3 stride-1 conv kernel: streams the 9 taps in-kernel (no im2col in HBM).
# Grid = (batch, OC tiles); input block = one padded image; output = bf16 + stats.
# ----------------------------------------------------------------------------
def _make_fused_conv_kernel(KH, KW, OH, OW, Cin, TOC):
    def kernel(x_ref, w_ref, y_ref, sum_ref, sq_ref, acc_ref):
        # x_ref: (Hp, Wp, Cin) bf16   w_ref: (KH*KW, Cin, TOC) bf16
        for t in range(KH * KW):
            kh, kw = divmod(t, KW)
            a = x_ref[kh:kh + OH, kw:kw + OW, :].reshape(OH * OW, Cin)
            d = jnp.dot(a, w_ref[t], preferred_element_type=jnp.float32)
            if t == 0:
                acc_ref[...] = d
            else:
                acc_ref[...] += d
        acc = acc_ref[...]
        sum_ref[...] = jnp.sum(acc, axis=0, keepdims=True)
        sq_ref[...] = jnp.sum(acc * acc, axis=0, keepdims=True)
        y_ref[...] = acc.reshape(OH, OW, TOC).astype(y_ref.dtype)
    return kernel


def _conv3x3_s1_raw(x, layer):
    """x: (N,H,W,Cin) bf16 -> (Y bf16 (N,H,W,OC), psum (N,1,OC), psq (N,1,OC))."""
    KH, KW, Cin, OC = layer['meta']
    N, H, W, Cx = x.shape
    assert Cx == Cin and KH == 3 and KW == 3
    OH, OW = H, W
    Hp, Wp = H + 2, W + 2
    xp = jnp.pad(x, ((0, 0), (1, 1), (1, 1), (0, 0)))
    TOC = _n_plan(OC)
    return pl.pallas_call(
        _make_fused_conv_kernel(KH, KW, OH, OW, Cin, TOC),
        out_shape=(
            jax.ShapeDtypeStruct((N, OH, OW, OC), jnp.bfloat16),
            jax.ShapeDtypeStruct((N, 1, OC), jnp.float32),
            jax.ShapeDtypeStruct((N, 1, OC), jnp.float32),
        ),
        grid_spec=pltpu.PrefetchScalarGridSpec(
            num_scalar_prefetch=0,
            grid=(N, OC // TOC),
            in_specs=[
                pl.BlockSpec((None, Hp, Wp, Cin), lambda n, j: (n, 0, 0, 0)),
                pl.BlockSpec((KH * KW, Cin, TOC), lambda n, j: (0, 0, j)),
            ],
            out_specs=[
                pl.BlockSpec((None, OH, OW, TOC), lambda n, j: (n, 0, 0, j)),
                pl.BlockSpec((None, 1, TOC), lambda n, j: (n, 0, j)),
                pl.BlockSpec((None, 1, TOC), lambda n, j: (n, 0, j)),
            ],
            scratch_shapes=[pltpu.VMEM((OH * OW, TOC), jnp.float32)],
        ),
        compiler_params=pltpu.CompilerParams(
            dimension_semantics=("parallel", "parallel")),
    )(xp, layer['w_taps'])


# ----------------------------------------------------------------------------
# Training-mode BatchNorm finalize (batch statistics, biased variance)
# ----------------------------------------------------------------------------
def _bn_scale_bias(psum, psq, count, gamma, beta, eps=_BN_EPS):
    # Matches the PyTorch module's default (training-mode) forward.
    # TODO(synk): eval-mode running-stats path could fuse scale/bias/ReLU straight
    # into the conv kernels' final step; E[x^2]-E[x]^2 could also use a shifted
    # finalize for better numerics on huge activations.
    s = jnp.sum(psum, axis=tuple(range(psum.ndim - 1)))
    q = jnp.sum(psq, axis=tuple(range(psq.ndim - 1)))
    mean = s / float(count)
    var = jnp.maximum(q / float(count) - mean * mean, 0.0)
    inv = lax.rsqrt(var + eps)
    scale = gamma * inv
    bias = beta - mean * scale
    return scale.reshape(1, -1), bias.reshape(1, -1)


# ----------------------------------------------------------------------------
# BN-apply (+ residual + ReLU) epilogues
# ----------------------------------------------------------------------------
def _make_bn_apply_4d_kernel(has_res, relu):
    if has_res:
        def kernel(y_ref, s_ref, b_ref, r_ref, o_ref):
            out = (y_ref[...].astype(jnp.float32) * s_ref[...] + b_ref[...]
                   + r_ref[...].astype(jnp.float32))
            if relu:
                out = jnp.maximum(out, 0.0)
            o_ref[...] = out.astype(o_ref.dtype)
    else:
        def kernel(y_ref, s_ref, b_ref, o_ref):
            out = y_ref[...].astype(jnp.float32) * s_ref[...] + b_ref[...]
            if relu:
                out = jnp.maximum(out, 0.0)
            o_ref[...] = out.astype(o_ref.dtype)
    return kernel


def _apply_bn_4d(y, scale, bias, residual, *, relu):
    N, OH, OW, OC = y.shape
    TOC = _n_plan(OC)
    in_specs = [
        pl.BlockSpec((None, OH, OW, TOC), lambda n, j: (n, 0, 0, j)),
        pl.BlockSpec((1, TOC), lambda n, j: (0, j)),
        pl.BlockSpec((1, TOC), lambda n, j: (0, j)),
    ]
    args = [y, scale, bias]
    if residual is not None:
        in_specs.append(pl.BlockSpec((None, OH, OW, TOC), lambda n, j: (n, 0, 0, j)))
        args.append(residual)
    return pl.pallas_call(
        _make_bn_apply_4d_kernel(residual is not None, relu),
        out_shape=jax.ShapeDtypeStruct((N, OH, OW, OC), jnp.bfloat16),
        grid_spec=pltpu.PrefetchScalarGridSpec(
            num_scalar_prefetch=0,
            grid=(N, OC // TOC),
            in_specs=in_specs,
            out_specs=pl.BlockSpec((None, OH, OW, TOC), lambda n, j: (n, 0, 0, j)),
        ),
        compiler_params=pltpu.CompilerParams(
            dimension_semantics=("parallel", "parallel")),
    )(*args)


def _make_bn_apply_2d_kernel(relu):
    def kernel(y_ref, s_ref, b_ref, o_ref):
        out = y_ref[...].astype(jnp.float32) * s_ref[...] + b_ref[...]
        if relu:
            out = jnp.maximum(out, 0.0)
        o_ref[...] = out.astype(o_ref.dtype)
    return kernel


def _apply_bn_2d(Y, scale, bias, *, relu, TM, TN):
    Mp, OC = Y.shape
    return pl.pallas_call(
        _make_bn_apply_2d_kernel(relu),
        out_shape=jax.ShapeDtypeStruct((Mp, OC), jnp.bfloat16),
        grid_spec=pltpu.PrefetchScalarGridSpec(
            num_scalar_prefetch=0,
            grid=(Mp // TM, OC // TN),
            in_specs=[
                pl.BlockSpec((TM, TN), lambda i, j: (i, j)),
                pl.BlockSpec((1, TN), lambda i, j: (0, j)),
                pl.BlockSpec((1, TN), lambda i, j: (0, j)),
            ],
            out_specs=pl.BlockSpec((TM, TN), lambda i, j: (i, j)),
        ),
        compiler_params=pltpu.CompilerParams(
            dimension_semantics=("parallel", "parallel")),
    )(Y, scale, bias)


# ----------------------------------------------------------------------------
# Conv + BN (+ residual) (+ ReLU) wrappers
# ----------------------------------------------------------------------------
def conv_bn_fused(x, layer, *, relu=True, residual=None):
    """3x3, stride-1, pad-1 conv with in-kernel tap streaming."""
    N, H, W, _ = x.shape
    y, psum, psq = _conv3x3_s1_raw(x, layer)
    scale, bias = _bn_scale_bias(psum, psq, N * H * W, layer['gamma'], layer['beta'])
    return _apply_bn_4d(y, scale, bias, residual, relu=relu)


def conv_bn_im2col(x, layer, stride, pad, *, relu):
    """Strided convs (7x7 stem, 3x3/s2 stage heads, 1x1/s2 downsamples).
    TODO(synk): stream taps for strided convs too (space-to-depth phase split)."""
    KH, KW, Cin, OC = layer['meta']
    N, H, W, Cx = x.shape
    assert Cx == Cin
    OH = (H + 2 * pad - KH) // stride + 1
    OW = (W + 2 * pad - KW) // stride + 1
    M = N * OH * OW
    K = KH * KW * Cin
    Kp, TK = _k_plan(K)
    TN = _n_plan(OC)
    Mp, TM = _m_plan(M)

    if KH == 1 and KW == 1:
        A = x[:, ::stride, ::stride, :][:, :OH, :OW, :].reshape(M, K)
    else:
        xpd = jnp.pad(x, ((0, 0), (pad, pad), (pad, pad), (0, 0)))
        cols = [xpd[:, kh:kh + stride * (OH - 1) + 1:stride,
                    kw:kw + stride * (OW - 1) + 1:stride, :]
                for kh in range(KH) for kw in range(KW)]
        A = jnp.concatenate(cols, axis=-1).reshape(M, K)
    if Kp > K:
        A = jnp.pad(A, ((0, 0), (0, Kp - K)))
    if Mp > M:
        A = jnp.pad(A, ((0, Mp - M), (0, 0)))

    Y, psum, psq = _matmul_with_stats(A, layer['w_mat'], TM, TN, TK)
    scale, bias = _bn_scale_bias(psum, psq, M, layer['gamma'], layer['beta'])
    out = _apply_bn_2d(Y, scale, bias, relu=relu, TM=TM, TN=TN)
    return out[:M].reshape(N, OH, OW, OC)


# ----------------------------------------------------------------------------
# Max-pool: Pallas kernel produces the stride-1 3x3 max map from the padded
# input (one image block per grid step); stride-2 subsample is a cheap slice.
# ----------------------------------------------------------------------------
def _make_maxpool_s1_kernel(OHs1, OWs1, k):
    def kernel(x_ref, o_ref):
        r = None
        for kh in range(k):
            for kw in range(k):
                v = x_ref[kh:kh + OHs1, kw:kw + OWs1, :]
                r = v if r is None else jnp.maximum(r, v)
        o_ref[...] = r
    return kernel


def maxpool2d(x, k=3, stride=2, pad=1):
    # Zero padding is equivalent to torch's -inf padding here because the input
    # is post-ReLU (>= 0).
    N, H, W, C = x.shape
    OH = (H + 2 * pad - k) // stride + 1
    OW = (W + 2 * pad - k) // stride + 1
    Hp, Wp = H + 2 * pad, W + 2 * pad
    OHs1, OWs1 = Hp - k + 1, Wp - k + 1
    xp = jnp.pad(x, ((0, 0), (pad, pad), (pad, pad), (0, 0)))
    p = pl.pallas_call(
        _make_maxpool_s1_kernel(OHs1, OWs1, k),
        out_shape=jax.ShapeDtypeStruct((N, OHs1, OWs1, C), x.dtype),
        grid_spec=pltpu.PrefetchScalarGridSpec(
            num_scalar_prefetch=0,
            grid=(N,),
            in_specs=[pl.BlockSpec((None, Hp, Wp, C), lambda n: (n, 0, 0, 0))],
            out_specs=pl.BlockSpec((None, OHs1, OWs1, C), lambda n: (n, 0, 0, 0)),
        ),
        compiler_params=pltpu.CompilerParams(dimension_semantics=("parallel",)),
    )(xp)
    # TODO(synk): fold the stride-2 subsample into the kernel via strided stores.
    return p[:, ::stride, ::stride, :][:, :OH, :OW, :]


# ----------------------------------------------------------------------------
# Classifier head: single fused matmul + bias kernel (no stats / extra pass)
# ----------------------------------------------------------------------------
def _linear_kernel(a_ref, w_ref, b_ref, o_ref):
    o_ref[...] = (jnp.dot(a_ref[...], w_ref[...],
                          preferred_element_type=jnp.float32) + b_ref[...])


def linear(feat, fc):
    Kin, OC, OCp = fc['meta']
    Nb = feat.shape[0]
    Mp = _round_up(max(Nb, 8), 8)
    A = feat.astype(jnp.bfloat16)
    if Mp > Nb:
        A = jnp.pad(A, ((0, Mp - Nb), (0, 0)))
    out = pl.pallas_call(
        _linear_kernel,
        out_shape=jax.ShapeDtypeStruct((Mp, OCp), jnp.float32),
        grid_spec=pltpu.PrefetchScalarGridSpec(
            num_scalar_prefetch=0,
            grid=(1,),
            in_specs=[
                pl.BlockSpec((Mp, Kin), lambda i: (0, 0)),
                pl.BlockSpec((Kin, OCp), lambda i: (0, 0)),
                pl.BlockSpec((1, OCp), lambda i: (0, 0)),
            ],
            out_specs=pl.BlockSpec((Mp, OCp), lambda i: (0, 0)),
        ),
    )(A, fc['w'], fc['bias'])
    return out[:Nb, :OC]


# ----------------------------------------------------------------------------
# ResNet-18 structure + one-time weight preparation
# ----------------------------------------------------------------------------
def _prep_conv_bn(key, oc, ic, kh, kw, *, fused):
    fan_in = ic * kh * kw
    w = jax.random.normal(key, (oc, ic, kh, kw), jnp.float32) * (2.0 / fan_in) ** 0.5
    layer = {'meta': (kh, kw, ic, oc),
             'gamma': jnp.ones((oc,), jnp.float32),
             'beta': jnp.zeros((oc,), jnp.float32)}
    wt = jnp.transpose(w, (2, 3, 1, 0))                      # (kh, kw, ic, oc)
    if fused:
        layer['w_taps'] = wt.reshape(kh * kw, ic, oc).astype(jnp.bfloat16)
    else:
        K = kh * kw * ic
        Kp, _ = _k_plan(K)
        B = wt.reshape(K, oc)
        if Kp > K:
            B = jnp.pad(B, ((0, Kp - K), (0, 0)))
        layer['w_mat'] = B.astype(jnp.bfloat16)
    return layer


def init_params(key, img_channels=3, num_classes=10):
    keys = iter(jax.random.split(key, 64))
    params = {'stem': _prep_conv_bn(next(keys), 64, img_channels, 7, 7, fused=False)}
    stages = []
    in_c = 64
    for out_c, n_blocks, stride in [(64, 2, 1), (128, 2, 2), (256, 2, 2), (512, 2, 2)]:
        blocks = []
        for b in range(n_blocks):
            s = stride if b == 0 else 1
            blocks.append({
                'stride': s,
                'conv1': _prep_conv_bn(next(keys), out_c, in_c, 3, 3, fused=(s == 1)),
                'conv2': _prep_conv_bn(next(keys), out_c, out_c, 3, 3, fused=True),
                # Reference _make_layer: downsample only when stride != 1.
                'down': (_prep_conv_bn(next(keys), out_c, in_c, 1, 1, fused=False)
                         if s != 1 else None),
            })
            in_c = out_c
        stages.append(blocks)
    params['stages'] = stages

    OCp = _round_up(num_classes, 128)
    fc_w = jax.random.normal(next(keys), (num_classes, 512), jnp.float32) * (1.0 / 512) ** 0.5
    fc_b = jnp.zeros((num_classes,), jnp.float32)
    params['fc'] = {
        'w': jnp.pad(fc_w.T, ((0, 0), (0, OCp - num_classes))).astype(jnp.bfloat16),
        'bias': jnp.pad(fc_b, (0, OCp - num_classes)).reshape(1, OCp),
        'meta': (512, num_classes, OCp),
    }
    return params


def basic_block(x, blk):
    s = blk['stride']
    if s == 1:
        out = conv_bn_fused(x, blk['conv1'], relu=True)
    else:
        out = conv_bn_im2col(x, blk['conv1'], s, 1, relu=True)
    identity = x
    if blk['down'] is not None:
        identity = conv_bn_im2col(x, blk['down'], s, 0, relu=False)
    out = conv_bn_fused(out, blk['conv2'], relu=True, residual=identity)
    return out


def resnet18_forward(x_nchw, params):
    x = jnp.transpose(x_nchw, (0, 2, 3, 1)).astype(jnp.bfloat16)   # NCHW -> NHWC bf16
    x = conv_bn_im2col(x, params['stem'], 2, 3, relu=True)
    x = maxpool2d(x, 3, 2, 1)
    for stage in params['stages']:
        for blk in stage:
            x = basic_block(x, blk)
    feat = jnp.mean(x.astype(jnp.float32), axis=(1, 2))            # adaptive avg pool (1,1)
    return linear(feat, params['fc'])                              # [N, num_classes]


if __name__ == "__main__":
    key = jax.random.PRNGKey(0)
    kp, kx = jax.random.split(key)
    params = init_params(kp, img_channels=3, num_classes=10)
    x = jax.random.normal(kx, (2, 3, 16, 16), jnp.float32)
    logits = resnet18_forward(x, params)
    jax.block_until_ready(logits)
    assert logits.shape == (2, 10)
    assert bool(jnp.all(jnp.isfinite(logits)))
    print("KERNEL_OK")
</pallas_src>

<mosaic_0001>
module attributes {stable_mosaic.version = 11 : i64} {
  func.func @_matmul_stats_kernel(%arg0: i32, %arg1: i32, %arg2: i32, %arg3: memref<128x256xbf16, #tpu.memory_space<vmem>>, %arg4: memref<256x64xbf16, #tpu.memory_space<vmem>>, %arg5: memref<128x64xbf16, #tpu.memory_space<vmem>>, %arg6: memref<1x1x64xf32, #tpu.memory_space<vmem>>, %arg7: memref<1x1x64xf32, #tpu.memory_space<vmem>>, %arg8: memref<128x64xf32, #tpu.memory_space<vmem>>) attributes {dimension_semantics = [#tpu.dimension_semantics<parallel>, #tpu.dimension_semantics<parallel>, #tpu.dimension_semantics<arbitrary>], iteration_bounds = array<i64: 1, 1, 1>, scalar_prefetch = 0 : i64, scratch_operands = 1 : i64, tpu.core_type = #tpu.core_type<tc>, window_params = [{transform_indices = @transform_0, window_bounds = array<i64: 128, 256>}, {transform_indices = @transform_1, window_bounds = array<i64: 256, 64>}, {transform_indices = @transform_2, window_bounds = array<i64: 128, 64>}, {transform_indices = @transform_3, window_bounds = array<i64: 1, 1, 64>}, {transform_indices = @transform_4, window_bounds = array<i64: 1, 1, 64>}]} {
    %c0_i32 = arith.constant 0 : i32
    %0 = arith.cmpi eq, %arg2, %c0_i32 : i32
    %1 = arith.extui %0 : i1 to i32
    %c0_i32_0 = arith.constant 0 : i32
    %2 = arith.cmpi ne, %1, %c0_i32_0 : i32
    scf.if %2 {
      %cst_10 = arith.constant 0.000000e+00 : f32
      %12 = vector.broadcast %cst_10 : f32 to vector<128x64xf32>
      %c0_11 = arith.constant 0 : index
      %c0_12 = arith.constant 0 : index
      %13 = vector.load %arg8[%c0_11, %c0_12] : memref<128x64xf32, #tpu.memory_space<vmem>>, vector<128x64xf32>
      tpu.vector_store %arg8[%c0_11, %c0_12], %12 {strides = array<i32>} : memref<128x64xf32, #tpu.memory_space<vmem>>, vector<128x64xf32>,
    } else {
    }
    %c0 = arith.constant 0 : index
    %c0_1 = arith.constant 0 : index
    %3 = vector.load %arg8[%c0, %c0_1] : memref<128x64xf32, #tpu.memory_space<vmem>>, vector<128x64xf32>
    %c0_2 = arith.constant 0 : index
    %c0_3 = arith.constant 0 : index
    %4 = vector.load %arg3[%c0_2, %c0_3] : memref<128x256xbf16, #tpu.memory_space<vmem>>, vector<128x256xbf16>
    %c0_4 = arith.constant 0 : index
    %c0_5 = arith.constant 0 : index
    %5 = vector.load %arg4[%c0_4, %c0_5] : memref<256x64xbf16, #tpu.memory_space<vmem>>, vector<256x64xbf16>
    %cst = arith.constant dense<0.000000e+00> : vector<128x64xf32>
    %6 = tpu.matmul %4, %5, %cst {dimension_numbers = #tpu.dot_dimension_numbers<[1], [0], [0], [1], [0, 0, 1, 1], [], []>} : vector<128x256xbf16>, vector<256x64xbf16>, vector<128x64xf32> -> vector<128x64xf32>
    %7 = arith.addf %3, %6 : vector<128x64xf32>
    %c0_6 = arith.constant 0 : index
    %c0_7 = arith.constant 0 : index
    %8 = vector.load %arg8[%c0_6, %c0_7] : memref<128x64xf32, #tpu.memory_space<vmem>>, vector<128x64xf32>
    tpu.vector_store %arg8[%c0_6, %c0_7], %7 {strides = array<i32>} : memref<128x64xf32, #tpu.memory_space<vmem>>, vector<128x64xf32>,
    %c0_i32_8 = arith.constant 0 : i32
    %9 = arith.cmpi eq, %arg2, %c0_i32_8 : i32
    %10 = arith.extui %9 : i1 to i32
    %c0_i32_9 = arith.constant 0 : i32
    %11 = arith.cmpi ne, %10, %c0_i32_9 : i32
    scf.if %11 {
      %c0_10 = arith.constant 0 : index
      %c0_11 = arith.constant 0 : index
      %12 = vector.load %arg8[%c0_10, %c0_11] : memref<128x64xf32, #tpu.memory_space<vmem>>, vector<128x64xf32>
      %cst_12 = arith.constant dense<0.000000e+00> : vector<64xf32>
      %13 = vector.multi_reduction <add>, %12, %cst_12 [0] : vector<128x64xf32> to vector<64xf32>
      %14 = vector.shape_cast %13 : vector<64xf32> to vector<1x64xf32>
      %15 = vector.shape_cast %14 : vector<1x64xf32> to vector<1x1x64xf32>
      %c0_13 = arith.constant 0 : index
      %c0_14 = arith.constant 0 : index
      %c0_15 = arith.constant 0 : index
      %16 = vector.load %arg6[%c0_13, %c0_14, %c0_15] : memref<1x1x64xf32, #tpu.memory_space<vmem>>, vector<1x1x64xf32>
      tpu.vector_store %arg6[%c0_13, %c0_14, %c0_15], %15 {strides = array<i32>} : memref<1x1x64xf32, #tpu.memory_space<vmem>>, vector<1x1x64xf32>,
      %17 = arith.mulf %12, %12 : vector<128x64xf32>
      %cst_16 = arith.constant dense<0.000000e+00> : vector<64xf32>
      %18 = vector.multi_reduction <add>, %17, %cst_16 [0] : vector<128x64xf32> to vector<64xf32>
      %19 = vector.shape_cast %18 : vector<64xf32> to vector<1x64xf32>
      %20 = vector.shape_cast %19 : vector<1x64xf32> to vector<1x1x64xf32>
      %c0_17 = arith.constant 0 : index
      %c0_18 = arith.constant 0 : index
      %c0_19 = arith.constant 0 : index
      %21 = vector.load %arg7[%c0_17, %c0_18, %c0_19] : memref<1x1x64xf32, #tpu.memory_space<vmem>>, vector<1x1x64xf32>
      tpu.vector_store %arg7[%c0_17, %c0_18, %c0_19], %20 {strides = array<i32>} : memref<1x1x64xf32, #tpu.memory_space<vmem>>, vector<1x1x64xf32>,
      %22 = arith.truncf %12 : vector<128x64xf32> to vector<128x64xbf16>
      %c0_20 = arith.constant 0 : index
      %c0_21 = arith.constant 0 : index
      %23 = vector.load %arg5[%c0_20, %c0_21] : memref<128x64xbf16, #tpu.memory_space<vmem>>, vector<128x64xbf16>
      tpu.vector_store %arg5[%c0_20, %c0_21], %22 {strides = array<i32>} : memref<128x64xbf16, #tpu.memory_space<vmem>>, vector<128x64xbf16>,
    } else {
    }
    return
  }
  func.func @transform_0(%arg0: i32, %arg1: i32, %arg2: i32) -> (i32, i32) {
    %c0_i32 = arith.constant 0 : i32
    return %arg0, %arg2 : i32, i32
  }
  func.func @transform_1(%arg0: i32, %arg1: i32, %arg2: i32) -> (i32, i32) {
    %c0_i32 = arith.constant 0 : i32
    return %arg2, %arg1 : i32, i32
  }
  func.func @transform_2(%arg0: i32, %arg1: i32, %arg2: i32) -> (i32, i32) {
    %c0_i32 = arith.constant 0 : i32
    return %arg0, %arg1 : i32, i32
  }
  func.func @transform_3(%arg0: i32, %arg1: i32, %arg2: i32) -> (i32, i32, i32) {
    %c0_i32 = arith.constant 0 : i32
    %c0_i32_0 = arith.constant 0 : i32
    return %arg0, %c0_i32, %arg1 : i32, i32, i32
  }
  func.func @transform_4(%arg0: i32, %arg1: i32, %arg2: i32) -> (i32, i32, i32) {
    %c0_i32 = arith.constant 0 : i32
    %c0_i32_0 = arith.constant 0 : i32
    return %arg0, %c0_i32, %arg1 : i32, i32, i32
  }
}

</mosaic_0001>

<llo_original>
// kernel: tpu_custom_call.1
$region0: #{tpu_custom_call.1}
  #allocation0 [shape = 'u32[]', space=smem, size = 0x4, offset = 0x4, fixed_abs, tag = 'smem constant byte address 0x4 - core index']
  #allocation1 [shape = 'u32[144,128]{1,0:T(1,128)}', space=vmem, size = 0x12000, scoped, tag = 'internal scratch']
  #allocation2 [shape = 'f32[128,64]{1,0:T(8,128)}', space=vmem, size = 0x10000, scoped, tag = 'scratch operand']
  %s0 = inlined_call_operand.vmem [shape: bf16[128,256], index: 0, kind: input, shape index: {}]
  %s1 = inlined_call_operand.vmem [shape: bf16[256,64], index: 1, kind: input, shape index: {}]
  %s2 = inlined_call_operand.vmem [shape: bf16[128,64], index: 2, kind: output, shape index: {0}]
  %s3 = inlined_call_operand.hbm [shape: f32[1,1,64], index: 3, kind: output, shape index: {1}]
  %s4 = inlined_call_operand.hbm [shape: f32[1,1,64], index: 4, kind: output, shape index: {2}]
  %5 = xla_tuple %s2, %s3, %s4
  %s6 = sld [smem:[#allocation0]]
  $region42: #{tpu_custom_call.1} parent=0
    _
  %s8 = ssub.s32 1, %s6
  %s9 = scalar_select 0, %s8, %s6
  $region1: #{tpu_custom_call.1} parent=0
    #allocation3 [shape = 'u8[512]{0}', space=vmem, size = 0x400, scoped, tag = 'output window, operand 1, single buffered']
    #allocation4 [shape = 's32[1]{0}', space=sflag, size = 0x4, scoped, tag = 'scoped memory for tpu_custom_call.1']
    #allocation5 [shape = 'u8[512]{0}', space=vmem, size = 0x400, scoped, tag = 'output window, operand 2, single buffered']
    #allocation6 [shape = 's32[1]{0}', space=sflag, size = 0x4, scoped, tag = 'scoped memory for tpu_custom_call.1']
    %10 = vsyncpa [#allocation4], 0
    %11 = vsyncpa [#allocation6], 0
    // Predicated region
    $region2: #{tpu_custom_call.1} parent=1 // pred_check
      _
    $region3: #{tpu_custom_call.1} parent=1 // pred_check_branch
      %13 = sbr.rel (0) target = $region5
    $region4: #{tpu_custom_call.1} parent=1 // pred_region
      _
    $region5: #{tpu_custom_call.1} parent=1 // pred_fallthru
      _
    // Predicated region
    $region6: #{tpu_custom_call.1} parent=1 // pred_check
      _
    $region7: #{tpu_custom_call.1} parent=1 // pred_check_branch
      %15 = sbr.rel (0) target = $region9
    $region8: #{tpu_custom_call.1} parent=1 // pred_region
      _
    $region9: #{tpu_custom_call.1} parent=1 // pred_fallthru
      _
    %p17 = scmp.eq.s32.totalorder 0, 0
    // Predicated region
    $region10: #{tpu_custom_call.1} parent=1 // pred_check
      %p18 = pneg %p17
    $region11: #{tpu_custom_call.1} parent=1 // pred_check_branch
      %20 = sbr.rel (%p18) target = $region13
    $region12: #{tpu_custom_call.1} parent=1 // pred_region
      %vm21 = vcmask 523264
      %22 = vst.msk [vmem:[#allocation2] sm:$0xff] %vm21, 0.0
      %23 = vst.msk [vmem:[#allocation2 + $0x8] sm:$0xff] %vm21, 0.0
      %24 = vst.msk [vmem:[#allocation2 + $0x10] sm:$0xff] %vm21, 0.0
      %25 = vst.msk [vmem:[#allocation2 + $0x18] sm:$0xff] %vm21, 0.0
      %26 = vst.msk [vmem:[#allocation2 + $0x20] sm:$0xff] %vm21, 0.0
      %27 = vst.msk [vmem:[#allocation2 + $0x28] sm:$0xff] %vm21, 0.0
      %28 = vst.msk [vmem:[#allocation2 + $0x30] sm:$0xff] %vm21, 0.0
      %29 = vst.msk [vmem:[#allocation2 + $0x38] sm:$0xff] %vm21, 0.0
      %30 = vst.msk [vmem:[#allocation2 + $0x40] sm:$0xff] %vm21, 0.0
      %31 = vst.msk [vmem:[#allocation2 + $0x48] sm:$0xff] %vm21, 0.0
      %32 = vst.msk [vmem:[#allocation2 + $0x50] sm:$0xff] %vm21, 0.0
      %33 = vst.msk [vmem:[#allocation2 + $0x58] sm:$0xff] %vm21, 0.0
      %34 = vst.msk [vmem:[#allocation2 + $0x60] sm:$0xff] %vm21, 0.0
      %35 = vst.msk [vmem:[#allocation2 + $0x68] sm:$0xff] %vm21, 0.0
      %36 = vst.msk [vmem:[#allocation2 + $0x70] sm:$0xff] %vm21, 0.0
      %37 = vst.msk [vmem:[#allocation2 + $0x78] sm:$0xff] %vm21, 0.0
    $region13: #{tpu_custom_call.1} parent=1 // pred_fallthru
      _
    %v38 = vld [vmem:[#allocation2] sm:$0xff]
    %v39 = vld [vmem:[#allocation2 + $0x8] sm:$0xff]
    %v40 = vld [vmem:[#allocation2 + $0x10] sm:$0xff]
    %v41 = vld [vmem:[#allocation2 + $0x18] sm:$0xff]
    %v42 = vld [vmem:[#allocation2 + $0x20] sm:$0xff]
    %v43 = vld [vmem:[#allocation2 + $0x28] sm:$0xff]
    %v44 = vld [vmem:[#allocation2 + $0x30] sm:$0xff]
    %v45 = vld [vmem:[#allocation2 + $0x38] sm:$0xff]
    %v46 = vld [vmem:[#allocation2 + $0x40] sm:$0xff]
    %v47 = vld [vmem:[#allocation2 + $0x48] sm:$0xff]
    %v48 = vld [vmem:[#allocation2 + $0x50] sm:$0xff]
    %v49 = vld [vmem:[#allocation2 + $0x58] sm:$0xff]
    %v50 = vld [vmem:[#allocation2 + $0x60] sm:$0xff]
    %v51 = vld [vmem:[#allocation2 + $0x68] sm:$0xff]
    %v52 = vld [vmem:[#allocation2 + $0x70] sm:$0xff]
    %v53 = vld [vmem:[#allocation2 + $0x78] sm:$0xff]
    %v54 = vld [vmem:[%s0] sm:$0xff]
    %v55 = vld [vmem:[%s0 + $0x8] sm:$0xff]
    %v56 = vld [vmem:[%s0 + $0x10] sm:$0xff]
    %v57 = vld [vmem:[%s0 + $0x18] sm:$0xff]
    %v58 = vld [vmem:[%s0 + $0x20] sm:$0xff]
    %v59 = vld [vmem:[%s0 + $0x28] sm:$0xff]
    %v60 = vld [vmem:[%s0 + $0x30] sm:$0xff]
    %v61 = vld [vmem:[%s0 + $0x38] sm:$0xff]
    %v62 = vld [vmem:[%s0 + $0x40] sm:$0xff]
    %v63 = vld [vmem:[%s0 + $0x48] sm:$0xff]
    %v64 = vld [vmem:[%s0 + $0x50] sm:$0xff]
    %v65 = vld [vmem:[%s0 + $0x58] sm:$0xff]
    %v66 = vld [vmem:[%s0 + $0x60] sm:$0xff]
    %v67 = vld [vmem:[%s0 + $0x68] sm:$0xff]
    %v68 = vld [vmem:[%s0 + $0x70] sm:$0xff]
    %v69 = vld [vmem:[%s0 + $0x78] sm:$0xff]
    %v70 = vld [vmem:[%s1] sm:$0xf]
    %v71 = vld [vmem:[%s1 + $0x4] sm:$0xf]
    %v72 = vld [vmem:[%s1 + $0x8] sm:$0xf]
    %v73 = vld [vmem:[%s1 + $0xc] sm:$0xf]
    %v74 = vld [vmem:[%s1 + $0x10] sm:$0xf]
    %v75 = vld [vmem:[%s1 + $0x14] sm:$0xf]
    %v76 = vld [vmem:[%s1 + $0x18] sm:$0xf]
    %v77 = vld [vmem:[%s1 + $0x1c] sm:$0xf]
    %v78 = vld [vmem:[%s1 + $0x20] sm:$0xf]
    %v79 = vld [vmem:[%s1 + $0x24] sm:$0xf]
    %v80 = vld [vmem:[%s1 + $0x28] sm:$0xf]
    %v81 = vld [vmem:[%s1 + $0x2c] sm:$0xf]
    %v82 = vld [vmem:[%s1 + $0x30] sm:$0xf]
    %v83 = vld [vmem:[%s1 + $0x34] sm:$0xf]
    %v84 = vld [vmem:[%s1 + $0x38] sm:$0xf]
    %v85 = vld [vmem:[%s1 + $0x3c] sm:$0xf]
    %v86 = vld [vmem:[%s1 + $0x40] sm:$0xf]
    %v87 = vld [vmem:[%s1 + $0x44] sm:$0xf]
    %v88 = vld [vmem:[%s1 + $0x48] sm:$0xf]
    %v89 = vld [vmem:[%s1 + $0x4c] sm:$0xf]
    %v90 = vld [vmem:[%s1 + $0x50] sm:$0xf]
    %v91 = vld [vmem:[%s1 + $0x54] sm:$0xf]
    %v92 = vld [vmem:[%s1 + $0x58] sm:$0xf]
    %v93 = vld [vmem:[%s1 + $0x5c] sm:$0xf]
    %v94 = vld [vmem:[%s1 + $0x60] sm:$0xf]
    %v95 = vld [vmem:[%s1 + $0x64] sm:$0xf]
    %v96 = vld [vmem:[%s1 + $0x68] sm:$0xf]
    %v97 = vld [vmem:[%s1 + $0x6c] sm:$0xf]
    %v98 = vld [vmem:[%s1 + $0x70] sm:$0xf]
    %v99 = vld [vmem:[%s1 + $0x74] sm:$0xf]
    %v100 = vld [vmem:[%s1 + $0x78] sm:$0xf]
    %v101 = vld [vmem:[%s1 + $0x7c] sm:$0xf]
    %v118 = vunpack.c.l.b16 %v54
    %v119 = vunpack.c.h.b16 %v54
    %v120 = vunpack.c.l.b16 %v55
    %v121 = vunpack.c.h.b16 %v55
    %v122 = vunpack.c.l.b16 %v56
    %v123 = vunpack.c.h.b16 %v56
    %v124 = vunpack.c.l.b16 %v57
    %v125 = vunpack.c.h.b16 %v57
    %v126 = vunpack.c.l.b16 %v58
    %v127 = vunpack.c.h.b16 %v58
    %v128 = vunpack.c.l.b16 %v59
    %v129 = vunpack.c.h.b16 %v59
    %v130 = vunpack.c.l.b16 %v60
    %v131 = vunpack.c.h.b16 %v60
    %v132 = vunpack.c.l.b16 %v61
    %v133 = vunpack.c.h.b16 %v61
    %v134 = vunpack.c.l.b16 %v62
    %v135 = vunpack.c.h.b16 %v62
    %v136 = vunpack.c.l.b16 %v63
    %v137 = vunpack.c.h.b16 %v63
    %v138 = vunpack.c.l.b16 %v64
    %v139 = vunpack.c.h.b16 %v64
    %v140 = vunpack.c.l.b16 %v65
    %v141 = vunpack.c.h.b16 %v65
    %v142 = vunpack.c.l.b16 %v66
    %v143 = vunpack.c.h.b16 %v66
    %v144 = vunpack.c.l.b16 %v67
    %v145 = vunpack.c.h.b16 %v67
    %v146 = vunpack.c.l.b16 %v68
    %v147 = vunpack.c.h.b16 %v68
    %v148 = vunpack.c.l.b16 %v69
    %v149 = vunpack.c.h.b16 %v69
    %v150 = vpack.c.b16 %v120, %v118
    %v151 = vpack.c.b16 %v121, %v119
    %v152 = vpack.c.b16 %v124, %v122
    %v153 = vpack.c.b16 %v125, %v123
    %v154 = vpack.c.b16 %v128, %v126
    %v155 = vpack.c.b16 %v129, %v127
    %v156 = vpack.c.b16 %v132, %v130
    %v157 = vpack.c.b16 %v133, %v131
    %v158 = vpack.c.b16 %v136, %v134
    %v159 = vpack.c.b16 %v137, %v135
    %v160 = vpack.c.b16 %v140, %v138
    %v161 = vpack.c.b16 %v141, %v139
    %v162 = vpack.c.b16 %v144, %v142
    %v163 = vpack.c.b16 %v145, %v143
    %v164 = vpack.c.b16 %v148, %v146
    %v165 = vpack.c.b16 %v149, %v147
    %v214 = vunpack.c.l.b16 %v70
    %v215 = vunpack.c.l.b16 %v71
    %v216 = vunpack.c.l.b16 %v72
    %v217 = vunpack.c.l.b16 %v73
    %v218 = vunpack.c.l.b16 %v74
    %v219 = vunpack.c.l.b16 %v75
    %v220 = vunpack.c.l.b16 %v76
    %v221 = vunpack.c.l.b16 %v77
    %v222 = vunpack.c.l.b16 %v78
    %v223 = vunpack.c.l.b16 %v79
    %v224 = vunpack.c.l.b16 %v80
    %v225 = vunpack.c.l.b16 %v81
    %v226 = vunpack.c.l.b16 %v82
    %v227 = vunpack.c.l.b16 %v83
    %v228 = vunpack.c.l.b16 %v84
    %v229 = vunpack.c.l.b16 %v85
    %v230 = vunpack.c.l.b16 %v86
    %v231 = vunpack.c.l.b16 %v87
    %v232 = vunpack.c.l.b16 %v88
    %v233 = vunpack.c.l.b16 %v89
    %v234 = vunpack.c.l.b16 %v90
    %v235 = vunpack.c.l.b16 %v91
    %v236 = vunpack.c.l.b16 %v92
    %v237 = vunpack.c.l.b16 %v93
    %v238 = vunpack.c.l.b16 %v94
    %v239 = vunpack.c.l.b16 %v95
    %v240 = vunpack.c.l.b16 %v96
    %v241 = vunpack.c.l.b16 %v97
    %v242 = vunpack.c.l.b16 %v98
    %v243 = vunpack.c.l.b16 %v99
    %v244 = vunpack.c.l.b16 %v100
    %v245 = vunpack.c.l.b16 %v101
    %v246 = vpack.c.b16 %v215, %v214
    %v247 = vpack.c.b16 %v217, %v216
    %v248 = vpack.c.b16 %v219, %v218
    %v249 = vpack.c.b16 %v221, %v220
    %v250 = vpack.c.b16 %v223, %v222
    %v251 = vpack.c.b16 %v225, %v224
    %v252 = vpack.c.b16 %v227, %v226
    %v253 = vpack.c.b16 %v229, %v228
    %v254 = vpack.c.b16 %v231, %v230
    %v255 = vpack.c.b16 %v233, %v232
    %v256 = vpack.c.b16 %v235, %v234
    %v257 = vpack.c.b16 %v237, %v236
    %v258 = vpack.c.b16 %v239, %v238
    %v259 = vpack.c.b16 %v241, %v240
    %v260 = vpack.c.b16 %v243, %v242
    %v261 = vpack.c.b16 %v245, %v244
    %278 = vmatprep.subr.bf16.mxu0 0
    %279 = vmatpush1.bf16.msra.mxu0 %v246
    %280 = vmatprep.subr.bf16.mxu0 0
    %281 = vmatpush1.bf16.msra.mxu0 %v247
    %282 = vmatprep.subr.bf16.mxu0 0
    %283 = vmatpush1.bf16.msra.mxu0 %v248
    %284 = vmatprep.subr.bf16.mxu0 0
    %285 = vmatpush1.bf16.msra.mxu0 %v249
    %286 = vmatprep.subr.bf16.mxu0 0
    %287 = vmatpush1.bf16.msra.mxu0 %v250
    %288 = vmatprep.subr.bf16.mxu0 0
    %289 = vmatpush1.bf16.msra.mxu0 %v251
    %290 = vmatprep.subr.bf16.mxu0 0
    %291 = vmatpush1.bf16.msra.mxu0 %v252
    %292 = vmatprep.subr.bf16.mxu0 0
    %293 = vmatpush1.bf16.msra.mxu0 %v253
    %294 = vmatprep.subr.bf16.mxu0 0
    %295 = vmatpush1.bf16.msra.mxu0 %v254
    %296 = vmatprep.subr.bf16.mxu0 0
    %297 = vmatpush1.bf16.msra.mxu0 %v255
    %298 = vmatprep.subr.bf16.mxu0 0
    %299 = vmatpush1.bf16.msra.mxu0 %v256
    %300 = vmatprep.subr.bf16.mxu0 0
    %301 = vmatpush1.bf16.msra.mxu0 %v257
    %302 = vmatprep.subr.bf16.mxu0 0
    %303 = vmatpush1.bf16.msra.mxu0 %v258
    %304 = vmatprep.subr.bf16.mxu0 0
    %305 = vmatpush1.bf16.msra.mxu0 %v259
    %306 = vmatprep.subr.bf16.mxu0 0
    %307 = vmatpush1.bf16.msra.mxu0 %v260
    %308 = vmatprep.subr.bf16.mxu0 0
    %309 = vmatpush1.bf16.msra.mxu0 %v261
    %310 = vmatprep.mubr.bf16.mxu0 %v151
    %311 = vmatmul.mubr.bf16.gmra.mrb[0].mxu0 %v150
    %v312 = vpop.f32.mrb[0].mxu0
    %v313 = vadd.f32 0.0, %v312
    %v314 = vpop.f32.mrb[0].mxu0
    %v315 = vpop.f32.mrb[0].mxu0
    %v316 = vadd.f32 0.0, %v315
    %v317 = vpop.f32.mrb[0].mxu0
    %318 = vmatprep.mubr.bf16.mxu0 %v153
    %319 = vmatmul.mubr.bf16.gmra.mrb[0].mxu0 %v152
    %v320 = vpop.f32.mrb[0].mxu0
    %v321 = vadd.f32 0.0, %v320
    %v322 = vpop.f32.mrb[0].mxu0
    %v323 = vpop.f32.mrb[0].mxu0
    %v324 = vadd.f32 0.0, %v323
    %v325 = vpop.f32.mrb[0].mxu0
    %326 = vmatprep.mubr.bf16.mxu0 %v155
    %327 = vmatmul.mubr.bf16.gmra.mrb[0].mxu0 %v154
    %v328 = vpop.f32.mrb[0].mxu0
    %v329 = vadd.f32 0.0, %v328
    %v330 = vpop.f32.mrb[0].mxu0
    %v331 = vpop.f32.mrb[0].mxu0
    %v332 = vadd.f32 0.0, %v331
    %v333 = vpop.f32.mrb[0].mxu0
    %334 = vmatprep.mubr.bf16.mxu0 %v157
    %335 = vmatmul.mubr.bf16.gmra.mrb[0].mxu0 %v156
    %v336 = vpop.f32.mrb[0].mxu0
    %v337 = vadd.f32 0.0, %v336
    %v338 = vpop.f32.mrb[0].mxu0
    %v339 = vpop.f32.mrb[0].mxu0
    %v340 = vadd.f32 0.0, %v339
    %v341 = vpop.f32.mrb[0].mxu0
    %342 = vmatprep.mubr.bf16.mxu0 %v159
    %343 = vmatmul.mubr.bf16.gmra.mrb[0].mxu0 %v158
    %v344 = vpop.f32.mrb[0].mxu0
    %v345 = vadd.f32 0.0, %v344
    %v346 = vpop.f32.mrb[0].mxu0
    %v347 = vpop.f32.mrb[0].mxu0
    %v348 = vadd.f32 0.0, %v347
    %v349 = vpop.f32.mrb[0].mxu0
    %350 = vmatprep.mubr.bf16.mxu0 %v161
    %351 = vmatmul.mubr.bf16.gmra.mrb[0].mxu0 %v160
    %v352 = vpop.f32.mrb[0].mxu0
    %v353 = vadd.f32 0.0, %v352
    %v354 = vpop.f32.mrb[0].mxu0
    %v355 = vpop.f32.mrb[0].mxu0
    %v356 = vadd.f32 0.0, %v355
    %v357 = vpop.f32.mrb[0].mxu0
    %358 = vmatprep.mubr.bf16.mxu0 %v163
    %359 = vmatmul.mubr.bf16.gmra.mrb[0].mxu0 %v162
    %v360 = vpop.f32.mrb[0].mxu0
    %v361 = vadd.f32 0.0, %v360
    %v362 = vpop.f32.mrb[0].mxu0
    %v363 = vpop.f32.mrb[0].mxu0
    %v364 = vadd.f32 0.0, %v363
    %v365 = vpop.f32.mrb[0].mxu0
    %366 = vmatprep.mubr.bf16.mxu0 %v165
    %367 = vmatmul.mubr.bf16.gmra.mrb[0].mxu0 %v164
    %v368 = vpop.f32.mrb[0].mxu0
    %v369 = vadd.f32 0.0, %v368
    %v370 = vpop.f32.mrb[0].mxu0
    %v371 = vpop.f32.mrb[0].mxu0
    %v372 = vadd.f32 0.0, %v371
    %v373 = vpop.f32.mrb[0].mxu0
    %374 = vdwg.mxu0
    %v375 = vadd.f32 %v38, %v313
    %v376 = vadd.f32 %v39, %v316
    %v377 = vadd.f32 %v40, %v321
    %v378 = vadd.f32 %v41, %v324
    %v379 = vadd.f32 %v42, %v329
    %v380 = vadd.f32 %v43, %v332
    %v381 = vadd.f32 %v44, %v337
    %v382 = vadd.f32 %v45, %v340
    %v383 = vadd.f32 %v46, %v345
    %v384 = vadd.f32 %v47, %v348
    %v385 = vadd.f32 %v48, %v353
    %v386 = vadd.f32 %v49, %v356
    %v387 = vadd.f32 %v50, %v361
    %v388 = vadd.f32 %v51, %v364
    %v389 = vadd.f32 %v52, %v369
    %v390 = vadd.f32 %v53, %v372
    %vm391 = vcmask 523264
    %392 = vst.msk [vmem:[#allocation2] sm:$0xff] %vm391, %v375
    %393 = vst.msk [vmem:[#allocation2 + $0x8] sm:$0xff] %vm391, %v376
    %394 = vst.msk [vmem:[#allocation2 + $0x10] sm:$0xff] %vm391, %v377
    %395 = vst.msk [vmem:[#allocation2 + $0x18] sm:$0xff] %vm391, %v378
    %396 = vst.msk [vmem:[#allocation2 + $0x20] sm:$0xff] %vm391, %v379
    %397 = vst.msk [vmem:[#allocation2 + $0x28] sm:$0xff] %vm391, %v380
    %398 = vst.msk [vmem:[#allocation2 + $0x30] sm:$0xff] %vm391, %v381
    %399 = vst.msk [vmem:[#allocation2 + $0x38] sm:$0xff] %vm391, %v382
    %400 = vst.msk [vmem:[#allocation2 + $0x40] sm:$0xff] %vm391, %v383
    %401 = vst.msk [vmem:[#allocation2 + $0x48] sm:$0xff] %vm391, %v384
    %402 = vst.msk [vmem:[#allocation2 + $0x50] sm:$0xff] %vm391, %v385
    %403 = vst.msk [vmem:[#allocation2 + $0x58] sm:$0xff] %vm391, %v386
    %404 = vst.msk [vmem:[#allocation2 + $0x60] sm:$0xff] %vm391, %v387
    %405 = vst.msk [vmem:[#allocation2 + $0x68] sm:$0xff] %vm391, %v388
    %406 = vst.msk [vmem:[#allocation2 + $0x70] sm:$0xff] %vm391, %v389
    %407 = vst.msk [vmem:[#allocation2 + $0x78] sm:$0xff] %vm391, %v390
    // Predicated region
    $region14: #{tpu_custom_call.1} parent=1 // pred_check
      %p408 = pneg %p17
    $region15: #{tpu_custom_call.1} parent=1 // pred_check_branch
      %410 = sbr.rel (%p408) target = $region17
    $region16: #{tpu_custom_call.1} parent=1 // pred_region
      %v411 = vld [vmem:[#allocation2] sm:$0xff]
      %v412 = vld [vmem:[#allocation2 + $0x8] sm:$0xff]
      %v413 = vld [vmem:[#allocation2 + $0x10] sm:$0xff]
      %v414 = vld [vmem:[#allocation2 + $0x18] sm:$0xff]
      %v415 = vld [vmem:[#allocation2 + $0x20] sm:$0xff]
      %v416 = vld [vmem:[#allocation2 + $0x28] sm:$0xff]
      %v417 = vld [vmem:[#allocation2 + $0x30] sm:$0xff]
      %v418 = vld [vmem:[#allocation2 + $0x38] sm:$0xff]
      %v419 = vld [vmem:[#allocation2 + $0x40] sm:$0xff]
      %v420 = vld [vmem:[#allocation2 + $0x48] sm:$0xff]
      %v421 = vld [vmem:[#allocation2 + $0x50] sm:$0xff]
      %v422 = vld [vmem:[#allocation2 + $0x58] sm:$0xff]
      %v423 = vld [vmem:[#allocation2 + $0x60] sm:$0xff]
      %v424 = vld [vmem:[#allocation2 + $0x68] sm:$0xff]
      %v425 = vld [vmem:[#allocation2 + $0x70] sm:$0xff]
      %v426 = vld [vmem:[#allocation2 + $0x78] sm:$0xff]
      %v427 = vsel %vm391, %v411, 0.0
      %v428 = vsel %vm391, %v412, 0.0
      %v429 = vadd.f32 %v427, %v428
      %v430 = vsel %vm391, %v413, 0.0
      %v431 = vadd.f32 %v429, %v430
      %v432 = vsel %vm391, %v414, 0.0
      %v433 = vadd.f32 %v431, %v432
      %v434 = vsel %vm391, %v415, 0.0
      %v435 = vadd.f32 %v433, %v434
      %v436 = vsel %vm391, %v416, 0.0
      %v437 = vadd.f32 %v435, %v436
      %v438 = vsel %vm391, %v417, 0.0
      %v439 = vadd.f32 %v437, %v438
      %v440 = vsel %vm391, %v418, 0.0
      %v441 = vadd.f32 %v439, %v440
      %v442 = vsel %vm391, %v419, 0.0
      %v443 = vadd.f32 %v441, %v442
      %v444 = vsel %vm391, %v420, 0.0
      %v445 = vadd.f32 %v443, %v444
      %v446 = vsel %vm391, %v421, 0.0
      %v447 = vadd.f32 %v445, %v446
      %v448 = vsel %vm391, %v422, 0.0
      %v449 = vadd.f32 %v447, %v448
      %v450 = vsel %vm391, %v423, 0.0
      %v451 = vadd.f32 %v449, %v450
      %v452 = vsel %vm391, %v424, 0.0
      %v453 = vadd.f32 %v451, %v452
      %v454 = vsel %vm391, %v425, 0.0
      %v455 = vadd.f32 %v453, %v454
      %v456 = vsel %vm391, %v426, 0.0
      %v457 = vadd.f32 %v455, %v456
      %v458 = vrot.slane %v457, 4
      %v459 = vadd.f32 %v457, %v458
      %v460 = vrot.slane %v459, 2
      %v461 = vadd.f32 %v459, %v460
      %v462 = vrot.slane %v461, 1
      %v463 = vadd.f32 %v461, %v462
      %vm464 = vcmask 516096
      %465 = vst.msk [vmem:[#allocation3] sm:$0x1] %vm464, %v463
      %v466 = vmul.f32 %v411, %v411
      %v467 = vmul.f32 %v412, %v412
      %v468 = vmul.f32 %v413, %v413
      %v469 = vmul.f32 %v414, %v414
      %v470 = vmul.f32 %v415, %v415
      %v471 = vmul.f32 %v416, %v416
      %v472 = vmul.f32 %v417, %v417
      %v473 = vmul.f32 %v418, %v418
      %v474 = vmul.f32 %v419, %v419
      %v475 = vmul.f32 %v420, %v420
      %v476 = vmul.f32 %v421, %v421
      %v477 = vmul.f32 %v422, %v422
      %v478 = vmul.f32 %v423, %v423
      %v479 = vmul.f32 %v424, %v424
      %v480 = vmul.f32 %v425, %v425
      %v481 = vmul.f32 %v426, %v426
      %v482 = vsel %vm391, %v466, 0.0
      %v483 = vsel %vm391, %v467, 0.0
      %v484 = vadd.f32 %v482, %v483
      %v485 = vsel %vm391, %v468, 0.0
      %v486 = vadd.f32 %v484, %v485
      %v487 = vsel %vm391, %v469, 0.0
      %v488 = vadd.f32 %v486, %v487
      %v489 = vsel %vm391, %v470, 0.0
      %v490 = vadd.f32 %v488, %v489
      %v491 = vsel %vm391, %v471, 0.0
      %v492 = vadd.f32 %v490, %v491
      %v493 = vsel %vm391, %v472, 0.0
      %v494 = vadd.f32 %v492, %v493
      %v495 = vsel %vm391, %v473, 0.0
      %v496 = vadd.f32 %v494, %v495
      %v497 = vsel %vm391, %v474, 0.0
      %v498 = vadd.f32 %v496, %v497
      %v499 = vsel %vm391, %v475, 0.0
      %v500 = vadd.f32 %v498, %v499
      %v501 = vsel %vm391, %v476, 0.0
      %v502 = vadd.f32 %v500, %v501
      %v503 = vsel %vm391, %v477, 0.0
      %v504 = vadd.f32 %v502, %v503
      %v505 = vsel %vm391, %v478, 0.0
      %v506 = vadd.f32 %v504, %v505
      %v507 = vsel %vm391, %v479, 0.0
      %v508 = vadd.f32 %v506, %v507
      %v509 = vsel %vm391, %v480, 0.0
      %v510 = vadd.f32 %v508, %v509
      %v511 = vsel %vm391, %v481, 0.0
      %v512 = vadd.f32 %v510, %v511
      %v513 = vrot.slane %v512, 4
      %v514 = vadd.f32 %v512, %v513
      %v515 = vrot.slane %v514, 2
      %v516 = vadd.f32 %v514, %v515
      %v517 = vrot.slane %v516, 1
      %v518 = vadd.f32 %v516, %v517
      %519 = vst.msk [vmem:[#allocation5] sm:$0x1] %vm464, %v518
      %v520 = vpack.c.bf16 %v412, %v411
      %v521 = vpack.c.bf16 %v414, %v413
      %v522 = vpack.c.bf16 %v416, %v415
      %v523 = vpack.c.bf16 %v418, %v417
      %v524 = vpack.c.bf16 %v420, %v419
      %v525 = vpack.c.bf16 %v422, %v421
      %v526 = vpack.c.bf16 %v424, %v423
      %v527 = vpack.c.bf16 %v426, %v425
      %v536 = vunpack.c.l.b16 %v520
      %v537 = vunpack.c.h.b16 %v520
      %v538 = vunpack.c.l.b16 %v521
      %v539 = vunpack.c.h.b16 %v521
      %v540 = vunpack.c.l.b16 %v522
      %v541 = vunpack.c.h.b16 %v522
      %v542 = vunpack.c.l.b16 %v523
      %v543 = vunpack.c.h.b16 %v523
      %v544 = vunpack.c.l.b16 %v524
      %v545 = vunpack.c.h.b16 %v524
      %v546 = vunpack.c.l.b16 %v525
      %v547 = vunpack.c.h.b16 %v525
      %v548 = vunpack.c.l.b16 %v526
      %v549 = vunpack.c.h.b16 %v526
      %v550 = vunpack.c.l.b16 %v527
      %v551 = vunpack.c.h.b16 %v527
      %v552 = vpack.c.b16 %v536, %v536
      %v553 = vpack.c.b16 %v537, %v537
      %v554 = vpack.c.b16 %v538, %v538
      %v555 = vpack.c.b16 %v539, %v539
      %v556 = vpack.c.b16 %v540, %v540
      %v557 = vpack.c.b16 %v541, %v541
      %v558 = vpack.c.b16 %v542, %v542
      %v559 = vpack.c.b16 %v543, %v543
      %v560 = vpack.c.b16 %v544, %v544
      %v561 = vpack.c.b16 %v545, %v545
      %v562 = vpack.c.b16 %v546, %v546
      %v563 = vpack.c.b16 %v547, %v547
      %v564 = vpack.c.b16 %v548, %v548
      %v565 = vpack.c.b16 %v549, %v549
      %v566 = vpack.c.b16 %v550, %v550
      %v567 = vpack.c.b16 %v551, %v551
      %vm584 = vcmask 519168
      %585 = vst.msk [vmem:[%s2] sm:$0xf] %vm584, %v552
      %586 = vst.msk [vmem:[%s2 + $0x4] sm:$0xf] %vm584, %v553
      %587 = vst.msk [vmem:[%s2 + $0x8] sm:$0xf] %vm584, %v554
      %588 = vst.msk [vmem:[%s2 + $0xc] sm:$0xf] %vm584, %v555
      %589 = vst.msk [vmem:[%s2 + $0x10] sm:$0xf] %vm584, %v556
      %590 = vst.msk [vmem:[%s2 + $0x14] sm:$0xf] %vm584, %v557
      %591 = vst.msk [vmem:[%s2 + $0x18] sm:$0xf] %vm584, %v558
      %592 = vst.msk [vmem:[%s2 + $0x1c] sm:$0xf] %vm584, %v559
      %593 = vst.msk [vmem:[%s2 + $0x20] sm:$0xf] %vm584, %v560
      %594 = vst.msk [vmem:[%s2 + $0x24] sm:$0xf] %vm584, %v561
      %595 = vst.msk [vmem:[%s2 + $0x28] sm:$0xf] %vm584, %v562
      %596 = vst.msk [vmem:[%s2 + $0x2c] sm:$0xf] %vm584, %v563
      %597 = vst.msk [vmem:[%s2 + $0x30] sm:$0xf] %vm584, %v564
      %598 = vst.msk [vmem:[%s2 + $0x34] sm:$0xf] %vm584, %v565
      %599 = vst.msk [vmem:[%s2 + $0x38] sm:$0xf] %vm584, %v566
      %600 = vst.msk [vmem:[%s2 + $0x3c] sm:$0xf] %vm584, %v567
    $region17: #{tpu_custom_call.1} parent=1 // pred_fallthru
      _
    // Predicated region
    $region18: #{tpu_custom_call.1} parent=1 // pred_check
      _
    $region19: #{tpu_custom_call.1} parent=1 // pred_check_branch
      %602 = sbr.rel (0) target = $region21
    $region20: #{tpu_custom_call.1} parent=1 // pred_region
      _
    $region21: #{tpu_custom_call.1} parent=1 // pred_fallthru
      _
    // Predicated region
    $region22: #{tpu_custom_call.1} parent=1 // pred_check
      _
    $region23: #{tpu_custom_call.1} parent=1 // pred_check_branch
      %604 = sbr.rel (0) target = $region25
    $region24: #{tpu_custom_call.1} parent=1 // pred_region
      %s606 = ssub.s32 16, 16
      %607 = vsyncadd [#allocation4], %s606
      %s609 = sshll.u32 [#allocation3], 4
      %s610 = int_to_ptr.vmem [resolvable:$true] %s609
      %612 = dma.vmem_to_hbm [thread:$0]  %s610, 16, %s3, [#allocation4]
    $region25: #{tpu_custom_call.1} parent=1 // pred_fallthru
      _
    // Predicated region
    $region26: #{tpu_custom_call.1} parent=1 // pred_check
      _
    $region27: #{tpu_custom_call.1} parent=1 // pred_check_branch
      %614 = sbr.rel (0) target = $region29
    $region28: #{tpu_custom_call.1} parent=1 // pred_region
      %s616 = ssub.s32 16, 16
      %617 = vsyncadd [#allocation6], %s616
      %s619 = sshll.u32 [#allocation5], 4
      %s620 = int_to_ptr.vmem [resolvable:$true] %s619
      %622 = dma.vmem_to_hbm [thread:$0]  %s620, 16, %s4, [#allocation6]
    $region29: #{tpu_custom_call.1} parent=1 // pred_fallthru
      _
    // Predicated region
    $region30: #{tpu_custom_call.1} parent=1 // pred_check
      _
    $region31: #{tpu_custom_call.1} parent=1 // pred_check_branch
      %624 = sbr.rel (0) target = $region33
    $region32: #{tpu_custom_call.1} parent=1 // pred_region
      _
    $region33: #{tpu_custom_call.1} parent=1 // pred_fallthru
      _
    // Predicated region
    $region34: #{tpu_custom_call.1} parent=1 // pred_check
      _
    $region35: #{tpu_custom_call.1} parent=1 // pred_check_branch
      %626 = sbr.rel (0) target = $region37
    $region36: #{tpu_custom_call.1} parent=1 // pred_region
      %627 = dma.done [#allocation4], 16
    $region37: #{tpu_custom_call.1} parent=1 // pred_fallthru
      _
    // Predicated region
    $region38: #{tpu_custom_call.1} parent=1 // pred_check
      _
    $region39: #{tpu_custom_call.1} parent=1 // pred_check_branch
      %629 = sbr.rel (0) target = $region41
    $region40: #{tpu_custom_call.1} parent=1 // pred_region
      %630 = dma.done [#allocation6], 16
    $region41: #{tpu_custom_call.1} parent=1 // pred_fallthru
      _
    %631 = vsyncpa [#allocation4], 1
    %632 = vsyncpa [#allocation6], 1

</llo_original>
